<compile_context>
chip_gen: v5e
topology: v5e:2x2
jax: 0.10.0
libtpu: 0.0.40
codegen_flags: <defaults>
</compile_context>

<pallas_src>
import jax
import jax.numpy as jnp
from jax import lax
from jax.experimental import pallas as pl
from jax.experimental.pallas import tpu as pltpu

EPS = 1e-5
PAD = 128          # lane-dense width used for all feature dims inside the kernel
N_HIDDEN = 3       # number of hidden (Linear+BN+ReLU+Dropout) blocks


# ---------------------------------------------------------------------------
# Kernel
# ---------------------------------------------------------------------------
def acaig_fcn_kernel(x_ref, w_ref, vec_ref, out_ref):
    """x_ref:   [B, 128] bf16 activations.
       w_ref:   [4, 128, 128] bf16 weights, pre-transposed to (in, out); index 3 = output layer.
       vec_ref: [10, 128] f32 packed rows = (b0, g0, be0, b1, g1, be1, b2, g2, be2, b_out).
       out_ref: [B, 128] f32 lane-dense output slab; true logits live in the first 10 lanes."""
    h = x_ref[...]  # bf16, feeds the MXU directly
    for li in range(N_HIDDEN):
        b = vec_ref[3 * li + 0:3 * li + 1, :]       # [1, 128] f32
        g = vec_ref[3 * li + 1:3 * li + 2, :]
        beta = vec_ref[3 * li + 2:3 * li + 3, :]
        # Linear (MXU, f32 accumulation)
        z = jnp.dot(h, w_ref[li], preferred_element_type=jnp.float32) + b
        # BatchNorm1d, training-mode batch statistics (biased variance), f32 math,
        # fused into a single per-column scale/shift.
        mean = jnp.mean(z, axis=0, keepdims=True)
        var = jnp.mean((z - mean) ** 2, axis=0, keepdims=True)
        s = g * lax.rsqrt(var + EPS)                # [1, 128]
        t = beta - mean * s                         # [1, 128]
        # Dropout(p=0.0) == identity; ReLU; cast back to bf16 for the next MXU feed.
        h = jnp.maximum(z * s + t, 0.0).astype(jnp.bfloat16)
    # Output Linear; unmasked, full-lane store.
    out_ref[...] = jnp.dot(h, w_ref[N_HIDDEN],
                           preferred_element_type=jnp.float32) + vec_ref[9:10, :]


# ---------------------------------------------------------------------------
# Wrapper
# ---------------------------------------------------------------------------
def _pad_to(a, shape, value=0.0):
    pads = [(0, t - s) for s, t in zip(a.shape, shape)]
    return jnp.pad(a, pads, constant_values=value)


def prepare_operands(x, params):
    """Pad every feature dim to 128, cast matmul operands to bf16, stack the four weight
       matrices into one (4,128,128) slab, and pack the small per-layer vectors
       (b, gamma, beta for each hidden layer + final bias) into one (10,128) f32 slab."""
    batch = x.shape[0]
    x_pad = _pad_to(x, (batch, PAD)).astype(jnp.bfloat16)
    w_slabs = []
    vec_rows = []
    for p in params[:-1]:
        w_slabs.append(_pad_to(p["w"], (PAD, PAD)).astype(jnp.bfloat16))
        vec_rows.append(_pad_to(p["b"], (1, PAD)))
        vec_rows.append(_pad_to(p["gamma"], (1, PAD), value=1.0))  # gamma=1 in padded lanes
        vec_rows.append(_pad_to(p["beta"], (1, PAD)))              # beta=0 in padded lanes
    w_slabs.append(_pad_to(params[-1]["w"], (PAD, PAD)).astype(jnp.bfloat16))
    vec_rows.append(_pad_to(params[-1]["b"], (1, PAD)))
    weights = jnp.stack(w_slabs, axis=0)                           # [4, 128, 128] bf16
    vecs = jnp.concatenate(vec_rows, axis=0).astype(jnp.float32)   # [10, 128]
    return x_pad, weights, vecs


def acaig_fcn_forward(x, params):
    """params: list of dicts, one per hidden layer with keys w (in,out), b, gamma, beta,
       plus a final dict with keys w, b for the output layer."""
    batch = x.shape[0]
    out_dim = params[-1]["w"].shape[1]
    x_pad, weights, vecs = prepare_operands(x, params)

    vmem_spec = pl.BlockSpec(memory_space=pltpu.MemorySpace.VMEM)
    out_pad = pl.pallas_call(
        acaig_fcn_kernel,
        out_shape=jax.ShapeDtypeStruct((batch, PAD), jnp.float32),
        in_specs=[vmem_spec] * 3,
        out_specs=vmem_spec,
    )(x_pad, weights, vecs)

    return out_pad[:, :out_dim]


# ---------------------------------------------------------------------------
# Parameters & reference
# ---------------------------------------------------------------------------
def init_params(key, input_dim, output_dim, hidden_dims):
    """Deterministic synthetic parameters (PyTorch-like uniform fan-in scaling).
       Weights are stored already transposed to (in, out)."""
    params = []
    in_features = input_dim
    dims = list(hidden_dims) + [output_dim]
    for li, out_features in enumerate(dims):
        key, kw, kb = jax.random.split(key, 3)
        bound = 1.0 / jnp.sqrt(jnp.float32(in_features))
        w = jax.random.uniform(kw, (in_features, out_features), jnp.float32,
                               minval=-bound, maxval=bound)
        b = jax.random.uniform(kb, (1, out_features), jnp.float32,
                               minval=-bound, maxval=bound)
        p = {"w": w, "b": b}
        if li < len(hidden_dims):
            p["gamma"] = jnp.ones((1, out_features), jnp.float32)  # BatchNorm1d defaults
            p["beta"] = jnp.zeros((1, out_features), jnp.float32)
        params.append(p)
        in_features = out_features
    return params


def reference_forward(x, params):
    """Pure-JAX reference mirroring the kernel's numerics (same padding, bf16 matmul
       operands, f32 fused BN math) so it validates the kernel implementation."""
    x_pad, weights, vecs = prepare_operands(x, params)
    h = x_pad
    for li in range(len(params) - 1):
        b = vecs[3 * li + 0:3 * li + 1, :]
        g = vecs[3 * li + 1:3 * li + 2, :]
        beta = vecs[3 * li + 2:3 * li + 3, :]
        z = jnp.dot(h, weights[li], preferred_element_type=jnp.float32) + b
        mean = jnp.mean(z, axis=0, keepdims=True)
        var = jnp.mean((z - mean) ** 2, axis=0, keepdims=True)
        s = g * lax.rsqrt(var + EPS)
        t = beta - mean * s
        h = jnp.maximum(z * s + t, 0.0).astype(jnp.bfloat16)
    out = jnp.dot(h, weights[-1], preferred_element_type=jnp.float32) + vecs[9:10, :]
    return out[:, :params[-1]["w"].shape[1]]


if __name__ == "__main__":
    key = jax.random.PRNGKey(0)
    batch = 8
    input_dim = 32
    output_dim = 10
    hidden_dims = [100, 100, 97]

    key, kx, kp = jax.random.split(key, 3)
    x = jax.random.normal(kx, (batch, input_dim), jnp.float32)
    params = init_params(kp, input_dim, output_dim, hidden_dims)

    out = acaig_fcn_forward(x, params)
    out = jax.block_until_ready(out)

    ref = reference_forward(x, params)
    assert out.shape == (batch, output_dim)
    assert jnp.allclose(out, ref, atol=2e-3, rtol=2e-3), "mismatch vs reference"

    print("KERNEL_OK")
</pallas_src>

<mosaic_0001>
module attributes {stable_mosaic.version = 11 : i64} {
  func.func @acaig_fcn_kernel(%arg0: memref<8x128xbf16, #tpu.memory_space<vmem>>, %arg1: memref<4x128x128xbf16, #tpu.memory_space<vmem>>, %arg2: memref<10x128xf32, #tpu.memory_space<vmem>>, %arg3: memref<8x128xf32, #tpu.memory_space<vmem>>) attributes {dimension_semantics = [], scalar_prefetch = 0 : i64, scratch_operands = 0 : i64, tpu.core_type = #tpu.core_type<tc>} {
    %c0 = arith.constant 0 : index
    %c0_0 = arith.constant 0 : index
    %0 = vector.load %arg0[%c0, %c0_0] : memref<8x128xbf16, #tpu.memory_space<vmem>>, vector<8x128xbf16>
    %c0_1 = arith.constant 0 : index
    %c0_2 = arith.constant 0 : index
    %1 = vector.load %arg2[%c0_1, %c0_2] : memref<10x128xf32, #tpu.memory_space<vmem>>, vector<1x128xf32>
    %c1 = arith.constant 1 : index
    %c0_3 = arith.constant 0 : index
    %2 = vector.load %arg2[%c1, %c0_3] : memref<10x128xf32, #tpu.memory_space<vmem>>, vector<1x128xf32>
    %c2 = arith.constant 2 : index
    %c0_4 = arith.constant 0 : index
    %3 = vector.load %arg2[%c2, %c0_4] : memref<10x128xf32, #tpu.memory_space<vmem>>, vector<1x128xf32>
    %c0_5 = arith.constant 0 : index
    %c0_6 = arith.constant 0 : index
    %c0_7 = arith.constant 0 : index
    %4 = vector.load %arg1[%c0_5, %c0_6, %c0_7] : memref<4x128x128xbf16, #tpu.memory_space<vmem>>, vector<1x128x128xbf16>
    %5 = vector.shape_cast %4 : vector<1x128x128xbf16> to vector<128x128xbf16>
    %cst = arith.constant dense<0.000000e+00> : vector<8x128xf32>
    %6 = tpu.matmul %0, %5, %cst {dimension_numbers = #tpu.dot_dimension_numbers<[1], [0], [0], [1], [0, 0, 1, 1], [], []>} : vector<8x128xbf16>, vector<128x128xbf16>, vector<8x128xf32> -> vector<8x128xf32>
    %7 = vector.broadcast %1 : vector<1x128xf32> to vector<8x128xf32>
    %8 = arith.addf %6, %7 : vector<8x128xf32>
    %cst_8 = arith.constant dense<0.000000e+00> : vector<128xf32>
    %9 = vector.multi_reduction <add>, %8, %cst_8 [0] : vector<8x128xf32> to vector<128xf32>
    %10 = vector.shape_cast %9 : vector<128xf32> to vector<1x128xf32>
    %cst_9 = arith.constant 8.000000e+00 : f32
    %11 = vector.broadcast %cst_9 : f32 to vector<1x128xf32>
    %12 = arith.divf %10, %11 : vector<1x128xf32>
    %13 = vector.broadcast %12 : vector<1x128xf32> to vector<8x128xf32>
    %14 = arith.subf %8, %13 : vector<8x128xf32>
    %15 = arith.mulf %14, %14 : vector<8x128xf32>
    %cst_10 = arith.constant dense<0.000000e+00> : vector<128xf32>
    %16 = vector.multi_reduction <add>, %15, %cst_10 [0] : vector<8x128xf32> to vector<128xf32>
    %17 = vector.shape_cast %16 : vector<128xf32> to vector<1x128xf32>
    %cst_11 = arith.constant 8.000000e+00 : f32
    %18 = vector.broadcast %cst_11 : f32 to vector<1x128xf32>
    %19 = arith.divf %17, %18 : vector<1x128xf32>
    %cst_12 = arith.constant 9.99999974E-6 : f32
    %20 = vector.broadcast %cst_12 : f32 to vector<1x128xf32>
    %21 = arith.addf %19, %20 : vector<1x128xf32>
    %22 = math.rsqrt %21 : vector<1x128xf32>
    %23 = arith.mulf %2, %22 : vector<1x128xf32>
    %24 = arith.mulf %12, %23 : vector<1x128xf32>
    %25 = arith.subf %3, %24 : vector<1x128xf32>
    %26 = vector.broadcast %23 : vector<1x128xf32> to vector<8x128xf32>
    %27 = arith.mulf %8, %26 : vector<8x128xf32>
    %28 = vector.broadcast %25 : vector<1x128xf32> to vector<8x128xf32>
    %29 = arith.addf %27, %28 : vector<8x128xf32>
    %cst_13 = arith.constant 0.000000e+00 : f32
    %30 = vector.broadcast %cst_13 : f32 to vector<8x128xf32>
    %31 = arith.maximumf %29, %30 : vector<8x128xf32>
    %32 = arith.truncf %31 : vector<8x128xf32> to vector<8x128xbf16>
    %c3 = arith.constant 3 : index
    %c0_14 = arith.constant 0 : index
    %33 = vector.load %arg2[%c3, %c0_14] : memref<10x128xf32, #tpu.memory_space<vmem>>, vector<1x128xf32>
    %c4 = arith.constant 4 : index
    %c0_15 = arith.constant 0 : index
    %34 = vector.load %arg2[%c4, %c0_15] : memref<10x128xf32, #tpu.memory_space<vmem>>, vector<1x128xf32>
    %c5 = arith.constant 5 : index
    %c0_16 = arith.constant 0 : index
    %35 = vector.load %arg2[%c5, %c0_16] : memref<10x128xf32, #tpu.memory_space<vmem>>, vector<1x128xf32>
    %c1_17 = arith.constant 1 : index
    %c0_18 = arith.constant 0 : index
    %c0_19 = arith.constant 0 : index
    %36 = vector.load %arg1[%c1_17, %c0_18, %c0_19] : memref<4x128x128xbf16, #tpu.memory_space<vmem>>, vector<1x128x128xbf16>
    %37 = vector.shape_cast %36 : vector<1x128x128xbf16> to vector<128x128xbf16>
    %cst_20 = arith.constant dense<0.000000e+00> : vector<8x128xf32>
    %38 = tpu.matmul %32, %37, %cst_20 {dimension_numbers = #tpu.dot_dimension_numbers<[1], [0], [0], [1], [0, 0, 1, 1], [], []>} : vector<8x128xbf16>, vector<128x128xbf16>, vector<8x128xf32> -> vector<8x128xf32>
    %39 = vector.broadcast %33 : vector<1x128xf32> to vector<8x128xf32>
    %40 = arith.addf %38, %39 : vector<8x128xf32>
    %cst_21 = arith.constant dense<0.000000e+00> : vector<128xf32>
    %41 = vector.multi_reduction <add>, %40, %cst_21 [0] : vector<8x128xf32> to vector<128xf32>
    %42 = vector.shape_cast %41 : vector<128xf32> to vector<1x128xf32>
    %cst_22 = arith.constant 8.000000e+00 : f32
    %43 = vector.broadcast %cst_22 : f32 to vector<1x128xf32>
    %44 = arith.divf %42, %43 : vector<1x128xf32>
    %45 = vector.broadcast %44 : vector<1x128xf32> to vector<8x128xf32>
    %46 = arith.subf %40, %45 : vector<8x128xf32>
    %47 = arith.mulf %46, %46 : vector<8x128xf32>
    %cst_23 = arith.constant dense<0.000000e+00> : vector<128xf32>
    %48 = vector.multi_reduction <add>, %47, %cst_23 [0] : vector<8x128xf32> to vector<128xf32>
    %49 = vector.shape_cast %48 : vector<128xf32> to vector<1x128xf32>
    %cst_24 = arith.constant 8.000000e+00 : f32
    %50 = vector.broadcast %cst_24 : f32 to vector<1x128xf32>
    %51 = arith.divf %49, %50 : vector<1x128xf32>
    %cst_25 = arith.constant 9.99999974E-6 : f32
    %52 = vector.broadcast %cst_25 : f32 to vector<1x128xf32>
    %53 = arith.addf %51, %52 : vector<1x128xf32>
    %54 = math.rsqrt %53 : vector<1x128xf32>
    %55 = arith.mulf %34, %54 : vector<1x128xf32>
    %56 = arith.mulf %44, %55 : vector<1x128xf32>
    %57 = arith.subf %35, %56 : vector<1x128xf32>
    %58 = vector.broadcast %55 : vector<1x128xf32> to vector<8x128xf32>
    %59 = arith.mulf %40, %58 : vector<8x128xf32>
    %60 = vector.broadcast %57 : vector<1x128xf32> to vector<8x128xf32>
    %61 = arith.addf %59, %60 : vector<8x128xf32>
    %cst_26 = arith.constant 0.000000e+00 : f32
    %62 = vector.broadcast %cst_26 : f32 to vector<8x128xf32>
    %63 = arith.maximumf %61, %62 : vector<8x128xf32>
    %64 = arith.truncf %63 : vector<8x128xf32> to vector<8x128xbf16>
    %c6 = arith.constant 6 : index
    %c0_27 = arith.constant 0 : index
    %65 = vector.load %arg2[%c6, %c0_27] : memref<10x128xf32, #tpu.memory_space<vmem>>, vector<1x128xf32>
    %c7 = arith.constant 7 : index
    %c0_28 = arith.constant 0 : index
    %66 = vector.load %arg2[%c7, %c0_28] : memref<10x128xf32, #tpu.memory_space<vmem>>, vector<1x128xf32>
    %c8 = arith.constant 8 : index
    %c0_29 = arith.constant 0 : index
    %67 = vector.load %arg2[%c8, %c0_29] : memref<10x128xf32, #tpu.memory_space<vmem>>, vector<1x128xf32>
    %c2_30 = arith.constant 2 : index
    %c0_31 = arith.constant 0 : index
    %c0_32 = arith.constant 0 : index
    %68 = vector.load %arg1[%c2_30, %c0_31, %c0_32] : memref<4x128x128xbf16, #tpu.memory_space<vmem>>, vector<1x128x128xbf16>
    %69 = vector.shape_cast %68 : vector<1x128x128xbf16> to vector<128x128xbf16>
    %cst_33 = arith.constant dense<0.000000e+00> : vector<8x128xf32>
    %70 = tpu.matmul %64, %69, %cst_33 {dimension_numbers = #tpu.dot_dimension_numbers<[1], [0], [0], [1], [0, 0, 1, 1], [], []>} : vector<8x128xbf16>, vector<128x128xbf16>, vector<8x128xf32> -> vector<8x128xf32>
    %71 = vector.broadcast %65 : vector<1x128xf32> to vector<8x128xf32>
    %72 = arith.addf %70, %71 : vector<8x128xf32>
    %cst_34 = arith.constant dense<0.000000e+00> : vector<128xf32>
    %73 = vector.multi_reduction <add>, %72, %cst_34 [0] : vector<8x128xf32> to vector<128xf32>
    %74 = vector.shape_cast %73 : vector<128xf32> to vector<1x128xf32>
    %cst_35 = arith.constant 8.000000e+00 : f32
    %75 = vector.broadcast %cst_35 : f32 to vector<1x128xf32>
    %76 = arith.divf %74, %75 : vector<1x128xf32>
    %77 = vector.broadcast %76 : vector<1x128xf32> to vector<8x128xf32>
    %78 = arith.subf %72, %77 : vector<8x128xf32>
    %79 = arith.mulf %78, %78 : vector<8x128xf32>
    %cst_36 = arith.constant dense<0.000000e+00> : vector<128xf32>
    %80 = vector.multi_reduction <add>, %79, %cst_36 [0] : vector<8x128xf32> to vector<128xf32>
    %81 = vector.shape_cast %80 : vector<128xf32> to vector<1x128xf32>
    %cst_37 = arith.constant 8.000000e+00 : f32
    %82 = vector.broadcast %cst_37 : f32 to vector<1x128xf32>
    %83 = arith.divf %81, %82 : vector<1x128xf32>
    %cst_38 = arith.constant 9.99999974E-6 : f32
    %84 = vector.broadcast %cst_38 : f32 to vector<1x128xf32>
    %85 = arith.addf %83, %84 : vector<1x128xf32>
    %86 = math.rsqrt %85 : vector<1x128xf32>
    %87 = arith.mulf %66, %86 : vector<1x128xf32>
    %88 = arith.mulf %76, %87 : vector<1x128xf32>
    %89 = arith.subf %67, %88 : vector<1x128xf32>
    %90 = vector.broadcast %87 : vector<1x128xf32> to vector<8x128xf32>
    %91 = arith.mulf %72, %90 : vector<8x128xf32>
    %92 = vector.broadcast %89 : vector<1x128xf32> to vector<8x128xf32>
    %93 = arith.addf %91, %92 : vector<8x128xf32>
    %cst_39 = arith.constant 0.000000e+00 : f32
    %94 = vector.broadcast %cst_39 : f32 to vector<8x128xf32>
    %95 = arith.maximumf %93, %94 : vector<8x128xf32>
    %96 = arith.truncf %95 : vector<8x128xf32> to vector<8x128xbf16>
    %c3_40 = arith.constant 3 : index
    %c0_41 = arith.constant 0 : index
    %c0_42 = arith.constant 0 : index
    %97 = vector.load %arg1[%c3_40, %c0_41, %c0_42] : memref<4x128x128xbf16, #tpu.memory_space<vmem>>, vector<1x128x128xbf16>
    %98 = vector.shape_cast %97 : vector<1x128x128xbf16> to vector<128x128xbf16>
    %cst_43 = arith.constant dense<0.000000e+00> : vector<8x128xf32>
    %99 = tpu.matmul %96, %98, %cst_43 {dimension_numbers = #tpu.dot_dimension_numbers<[1], [0], [0], [1], [0, 0, 1, 1], [], []>} : vector<8x128xbf16>, vector<128x128xbf16>, vector<8x128xf32> -> vector<8x128xf32>
    %c9 = arith.constant 9 : index
    %c0_44 = arith.constant 0 : index
    %100 = vector.load %arg2[%c9, %c0_44] : memref<10x128xf32, #tpu.memory_space<vmem>>, vector<1x128xf32>
    %101 = vector.broadcast %100 : vector<1x128xf32> to vector<8x128xf32>
    %102 = arith.addf %99, %101 : vector<8x128xf32>
    %c0_45 = arith.constant 0 : index
    %c0_46 = arith.constant 0 : index
    %103 = vector.load %arg3[%c0_45, %c0_46] : memref<8x128xf32, #tpu.memory_space<vmem>>, vector<8x128xf32>
    tpu.vector_store %arg3[%c0_45, %c0_46], %102 {strides = array<i32>} : memref<8x128xf32, #tpu.memory_space<vmem>>, vector<8x128xf32>,
    return
  }
}

</mosaic_0001>

<llo_original>
// kernel: tpu_custom_call.1
$region0: #{tpu_custom_call.1}
  #allocation0 [shape = 'u32[]', space=smem, size = 0x4, offset = 0x4, fixed_abs, tag = 'smem constant byte address 0x4 - core index']
  #allocation1 [shape = 'u32[72,128]{1,0:T(1,128)}', space=vmem, size = 0x9000, scoped, tag = 'internal scratch']
  %s0 = inlined_call_operand.hbm [shape: bf16[8,128], index: 0, kind: input, shape index: {}]
  %s1 = inlined_call_operand.hbm [shape: bf16[4,128,128], index: 1, kind: input, shape index: {}]
  %s2 = inlined_call_operand.hbm [shape: f32[10,128], index: 2, kind: input, shape index: {}]
  %s3 = inlined_call_operand.hbm [shape: f32[8,128], index: 3, kind: output, shape index: {}]
  %s4 = sld [smem:[#allocation0]]
  $region34: #{tpu_custom_call.1} parent=0
    _
  %s6 = ssub.s32 1, %s4
  %s7 = scalar_select 0, %s6, %s4
  $region1: #{tpu_custom_call.1} parent=0
    #allocation2 [shape = 'u8[2048]{0}', space=vmem, size = 0x800, scoped, tag = 'input window, operand 0, single buffered']
    #allocation3 [shape = 's32[1]{0}', space=sflag, size = 0x4, scoped, tag = 'scoped memory for tpu_custom_call.1']
    #allocation4 [shape = 's32[1]{0}', space=sflag, size = 0x4, scoped, tag = 'scoped memory for tpu_custom_call.1']
    #allocation5 [shape = 'u8[131072]{0}', space=vmem, size = 0x20000, scoped, tag = 'input window, operand 1, single buffered']
    #allocation6 [shape = 's32[1]{0}', space=sflag, size = 0x4, scoped, tag = 'scoped memory for tpu_custom_call.1']
    #allocation7 [shape = 'u8[8192]{0}', space=vmem, size = 0x2000, scoped, tag = 'input window, operand 2, single buffered']
    #allocation8 [shape = 'u8[4096]{0}', space=vmem, size = 0x1000, scoped, tag = 'output window, operand 0, single buffered']
    %8 = vsyncpa [#allocation3], 0
    %9 = vsyncpa [#allocation6], 0
    %10 = vsyncpa [#allocation4], 0
    // Predicated region
    $region2: #{tpu_custom_call.1} parent=1 // pred_check
      _
    $region3: #{tpu_custom_call.1} parent=1 // pred_check_branch
      %12 = sbr.rel (0) target = $region5
    $region4: #{tpu_custom_call.1} parent=1 // pred_region
      %14 = vsyncadd [#allocation3], 0
      %s16 = sshll.u32 %s0, 4
      %s17 = int_to_ptr.hbm [resolvable:$true] %s16
      %s18 = sshll.u32 [#allocation2], 4
      %s19 = int_to_ptr.vmem [resolvable:$true] %s18
      %21 = dma.hbm_to_vmem [thread:$0]  %s17, 64, %s19, [#allocation3]
    $region5: #{tpu_custom_call.1} parent=1 // pred_fallthru
      _
    // Predicated region
    $region6: #{tpu_custom_call.1} parent=1 // pred_check
      _
    $region7: #{tpu_custom_call.1} parent=1 // pred_check_branch
      %23 = sbr.rel (0) target = $region9
    $region8: #{tpu_custom_call.1} parent=1 // pred_region
      %25 = vsyncadd [#allocation6], 0
      %s26 = sshll.u32 %s1, 4
      %s27 = int_to_ptr.hbm [resolvable:$true] %s26
      %s28 = sshll.u32 [#allocation5], 4
      %s29 = int_to_ptr.vmem [resolvable:$true] %s28
      %34 = dma.hbm_to_vmem [thread:$0]  %s27, 4096, %s29, [#allocation6], 64, 64, 4
    $region9: #{tpu_custom_call.1} parent=1 // pred_fallthru
      _
    // Predicated region
    $region10: #{tpu_custom_call.1} parent=1 // pred_check
      _
    $region11: #{tpu_custom_call.1} parent=1 // pred_check_branch
      %36 = sbr.rel (0) target = $region13
    $region12: #{tpu_custom_call.1} parent=1 // pred_region
      %38 = vsyncadd [#allocation6], 0
      %s39 = sshll.u32 %s2, 4
      %s40 = int_to_ptr.hbm [resolvable:$true] %s39
      %s41 = sshll.u32 [#allocation7], 4
      %s42 = int_to_ptr.vmem [resolvable:$true] %s41
      %47 = dma.hbm_to_vmem [thread:$0]  %s40, 256, %s42, [#allocation6], 128, 128, 8
    $region13: #{tpu_custom_call.1} parent=1 // pred_fallthru
      _
    // Predicated region
    $region14: #{tpu_custom_call.1} parent=1 // pred_check
      _
    $region15: #{tpu_custom_call.1} parent=1 // pred_check_branch
      %49 = sbr.rel (0) target = $region17
    $region16: #{tpu_custom_call.1} parent=1 // pred_region
      %51 = dma.done [#allocation3], 64
    $region17: #{tpu_custom_call.1} parent=1 // pred_fallthru
      _
    // Predicated region
    $region18: #{tpu_custom_call.1} parent=1 // pred_check
      _
    $region19: #{tpu_custom_call.1} parent=1 // pred_check_branch
      %53 = sbr.rel (0) target = $region21
    $region20: #{tpu_custom_call.1} parent=1 // pred_region
      %55 = dma.done [#allocation6], 4096
    $region21: #{tpu_custom_call.1} parent=1 // pred_fallthru
      _
    // Predicated region
    $region22: #{tpu_custom_call.1} parent=1 // pred_check
      _
    $region23: #{tpu_custom_call.1} parent=1 // pred_check_branch
      %57 = sbr.rel (0) target = $region25
    $region24: #{tpu_custom_call.1} parent=1 // pred_region
      %59 = dma.done [#allocation6], 256
    $region25: #{tpu_custom_call.1} parent=1 // pred_fallthru
      _
    %v60 = vld [vmem:[#allocation2] sm:$0xf]
    %v61 = vld [vmem:[#allocation7] sm:$0x1]
    %v62 = vld [vmem:[#allocation7 + $0x1] sm:$0x1]
    %v63 = vld [vmem:[#allocation7 + $0x2] sm:$0x1]
    %v64 = vld [vmem:[#allocation5] sm:$0xf]
    %v65 = vld [vmem:[#allocation5 + $0x4] sm:$0xf]
    %v66 = vld [vmem:[#allocation5 + $0x8] sm:$0xf]
    %v67 = vld [vmem:[#allocation5 + $0xc] sm:$0xf]
    %v68 = vld [vmem:[#allocation5 + $0x10] sm:$0xf]
    %v69 = vld [vmem:[#allocation5 + $0x14] sm:$0xf]
    %v70 = vld [vmem:[#allocation5 + $0x18] sm:$0xf]
    %v71 = vld [vmem:[#allocation5 + $0x1c] sm:$0xf]
    %v72 = vld [vmem:[#allocation5 + $0x20] sm:$0xf]
    %v73 = vld [vmem:[#allocation5 + $0x24] sm:$0xf]
    %v74 = vld [vmem:[#allocation5 + $0x28] sm:$0xf]
    %v75 = vld [vmem:[#allocation5 + $0x2c] sm:$0xf]
    %v76 = vld [vmem:[#allocation5 + $0x30] sm:$0xf]
    %v77 = vld [vmem:[#allocation5 + $0x34] sm:$0xf]
    %v78 = vld [vmem:[#allocation5 + $0x38] sm:$0xf]
    %v79 = vld [vmem:[#allocation5 + $0x3c] sm:$0xf]
    %v80 = vperm.slane %v61, 0
    %v97 = vunpack.c.l.b16 %v64
    %v98 = vunpack.c.l.b16 %v65
    %v99 = vunpack.c.l.b16 %v66
    %v100 = vunpack.c.l.b16 %v67
    %v101 = vunpack.c.l.b16 %v68
    %v102 = vunpack.c.l.b16 %v69
    %v103 = vunpack.c.l.b16 %v70
    %v104 = vunpack.c.l.b16 %v71
    %v105 = vunpack.c.l.b16 %v72
    %v106 = vunpack.c.l.b16 %v73
    %v107 = vunpack.c.l.b16 %v74
    %v108 = vunpack.c.l.b16 %v75
    %v109 = vunpack.c.l.b16 %v76
    %v110 = vunpack.c.l.b16 %v77
    %v111 = vunpack.c.l.b16 %v78
    %v112 = vunpack.c.l.b16 %v79
    %v113 = vpack.c.b16 %v98, %v97
    %v114 = vpack.c.b16 %v100, %v99
    %v115 = vpack.c.b16 %v102, %v101
    %v116 = vpack.c.b16 %v104, %v103
    %v117 = vpack.c.b16 %v106, %v105
    %v118 = vpack.c.b16 %v108, %v107
    %v119 = vpack.c.b16 %v110, %v109
    %v120 = vpack.c.b16 %v112, %v111
    %129 = vmatpush.bf16.msra.mxu0 %v120
    %130 = vmatpush.bf16.msra.mxu0 %v119
    %131 = vmatpush.bf16.msra.mxu0 %v118
    %132 = vmatpush.bf16.msra.mxu0 %v117
    %133 = vmatpush.bf16.msra.mxu0 %v116
    %134 = vmatpush.bf16.msra.mxu0 %v115
    %135 = vmatpush.bf16.msra.mxu0 %v114
    %136 = vmatpush.bf16.msra.mxu0 %v113
    %137 = vmatmul.bf16.gmra.mxu0 %v60
    %v138 = vpop.f32.mrf.mxu0
    %v139 = vadd.f32 %v80, %v138
    %v140 = vpop.f32.mrf.mxu0
    %141 = vdwg.mxu0
    %v142 = vrot.slane %v139, 4
    %v143 = vadd.f32 %v139, %v142
    %v144 = vrot.slane %v143, 2
    %v145 = vadd.f32 %v143, %v144
    %v146 = vrot.slane %v145, 1
    %v147 = vadd.f32 %v145, %v146
    %v148 = vrcp.pop 8.0
    %v149 = vmul.f32 8.0, %v148
    %v150 = vsub.f32 1.0, %v149
    %v151 = vmul.f32 %v148, %v150
    %v152 = vadd.f32 %v148, %v151
    %vm153 = vweird.f32 %v148
    %v154 = vsel %vm153, %v148, %v152
    %v155 = vmul.f32 %v147, %v154
    %v156 = vsub.f32 %v139, %v155
    %v157 = vmul.f32 %v156, %v156
    %v158 = vrot.slane %v157, 4
    %v159 = vadd.f32 %v157, %v158
    %v160 = vrot.slane %v159, 2
    %v161 = vadd.f32 %v159, %v160
    %v162 = vrot.slane %v161, 1
    %v163 = vadd.f32 %v161, %v162
    %v164 = vmul.f32 %v163, %v154
    %v165 = vadd.f32 %v164, 1e-05
    %v166 = vrsqrt.pop %v165
    %v167 = vmul.f32 %v166, %v165
    %v168 = vmul.f32 %v167, %v166
    %v169 = vmul.f32 0.5, %v168
    %v170 = vsub.f32 1.5, %v169
    %v171 = vmul.f32 %v166, %v170
    %vm172 = vweird.f32 %v165
    %vm173 = vweird.f32 %v166
    %vm174 = vmor %vm172, %vm173
    %v175 = vsel %vm174, %v166, %v171
    %v176 = vmul.f32 %v62, %v175
    %v177 = vmul.f32 %v155, %v176
    %v178 = vsub.f32 %v63, %v177
    %v179 = vperm.slane %v176, 0
    %v180 = vmul.f32 %v139, %v179
    %v181 = vperm.slane %v178, 0
    %v182 = vadd.f32 %v180, %v181
    %v183 = vmax.f32 %v182, 0.0
    %v184 = vpack.c.bf16 %v183, %v183
    %v185 = vld [vmem:[#allocation7 + $0x3] sm:$0x1]
    %v186 = vld [vmem:[#allocation7 + $0x4] sm:$0x1]
    %v187 = vld [vmem:[#allocation7 + $0x5] sm:$0x1]
    %s188 = scalar_lea.vmem [#allocation5], 64
    %v189 = vld [vmem:[%s188] sm:$0xf]
    %v190 = vld [vmem:[%s188 + $0x4] sm:$0xf]
    %v191 = vld [vmem:[%s188 + $0x8] sm:$0xf]
    %v192 = vld [vmem:[%s188 + $0xc] sm:$0xf]
    %v193 = vld [vmem:[%s188 + $0x10] sm:$0xf]
    %v194 = vld [vmem:[%s188 + $0x14] sm:$0xf]
    %v195 = vld [vmem:[%s188 + $0x18] sm:$0xf]
    %v196 = vld [vmem:[%s188 + $0x1c] sm:$0xf]
    %v197 = vld [vmem:[%s188 + $0x20] sm:$0xf]
    %v198 = vld [vmem:[%s188 + $0x24] sm:$0xf]
    %v199 = vld [vmem:[%s188 + $0x28] sm:$0xf]
    %v200 = vld [vmem:[%s188 + $0x2c] sm:$0xf]
    %v201 = vld [vmem:[%s188 + $0x30] sm:$0xf]
    %v202 = vld [vmem:[%s188 + $0x34] sm:$0xf]
    %v203 = vld [vmem:[%s188 + $0x38] sm:$0xf]
    %v204 = vld [vmem:[%s188 + $0x3c] sm:$0xf]
    %v205 = vperm.slane %v185, 0
    %v222 = vunpack.c.l.b16 %v189
    %v223 = vunpack.c.l.b16 %v190
    %v224 = vunpack.c.l.b16 %v191
    %v225 = vunpack.c.l.b16 %v192
    %v226 = vunpack.c.l.b16 %v193
    %v227 = vunpack.c.l.b16 %v194
    %v228 = vunpack.c.l.b16 %v195
    %v229 = vunpack.c.l.b16 %v196
    %v230 = vunpack.c.l.b16 %v197
    %v231 = vunpack.c.l.b16 %v198
    %v232 = vunpack.c.l.b16 %v199
    %v233 = vunpack.c.l.b16 %v200
    %v234 = vunpack.c.l.b16 %v201
    %v235 = vunpack.c.l.b16 %v202
    %v236 = vunpack.c.l.b16 %v203
    %v237 = vunpack.c.l.b16 %v204
    %v238 = vpack.c.b16 %v223, %v222
    %v239 = vpack.c.b16 %v225, %v224
    %v240 = vpack.c.b16 %v227, %v226
    %v241 = vpack.c.b16 %v229, %v228
    %v242 = vpack.c.b16 %v231, %v230
    %v243 = vpack.c.b16 %v233, %v232
    %v244 = vpack.c.b16 %v235, %v234
    %v245 = vpack.c.b16 %v237, %v236
    %254 = vmatpush.bf16.msra.mxu0 %v245
    %255 = vmatpush.bf16.msra.mxu0 %v244
    %256 = vmatpush.bf16.msra.mxu0 %v243
    %257 = vmatpush.bf16.msra.mxu0 %v242
    %258 = vmatpush.bf16.msra.mxu0 %v241
    %259 = vmatpush.bf16.msra.mxu0 %v240
    %260 = vmatpush.bf16.msra.mxu0 %v239
    %261 = vmatpush.bf16.msra.mxu0 %v238
    %262 = vmatmul.bf16.gmra.mxu0 %v184
    %v263 = vpop.f32.mrf.mxu0
    %v264 = vadd.f32 %v205, %v263
    %v265 = vpop.f32.mrf.mxu0
    %266 = vdwg.mxu0
    %v267 = vrot.slane %v264, 4
    %v268 = vadd.f32 %v264, %v267
    %v269 = vrot.slane %v268, 2
    %v270 = vadd.f32 %v268, %v269
    %v271 = vrot.slane %v270, 1
    %v272 = vadd.f32 %v270, %v271
    %v273 = vmul.f32 %v272, %v154
    %v274 = vsub.f32 %v264, %v273
    %v275 = vmul.f32 %v274, %v274
    %v276 = vrot.slane %v275, 4
    %v277 = vadd.f32 %v275, %v276
    %v278 = vrot.slane %v277, 2
    %v279 = vadd.f32 %v277, %v278
    %v280 = vrot.slane %v279, 1
    %v281 = vadd.f32 %v279, %v280
    %v282 = vmul.f32 %v281, %v154
    %v283 = vadd.f32 %v282, 1e-05
    %v284 = vrsqrt.pop %v283
    %v285 = vmul.f32 %v284, %v283
    %v286 = vmul.f32 %v285, %v284
    %v287 = vmul.f32 0.5, %v286
    %v288 = vsub.f32 1.5, %v287
    %v289 = vmul.f32 %v284, %v288
    %vm290 = vweird.f32 %v283
    %vm291 = vweird.f32 %v284
    %vm292 = vmor %vm290, %vm291
    %v293 = vsel %vm292, %v284, %v289
    %v294 = vmul.f32 %v186, %v293
    %v295 = vmul.f32 %v273, %v294
    %v296 = vsub.f32 %v187, %v295
    %v297 = vperm.slane %v294, 0
    %v298 = vmul.f32 %v264, %v297
    %v299 = vperm.slane %v296, 0
    %v300 = vadd.f32 %v298, %v299
    %v301 = vmax.f32 %v300, 0.0
    %v302 = vpack.c.bf16 %v301, %v301
    %v303 = vld [vmem:[#allocation7 + $0x6] sm:$0x1]
    %v304 = vld [vmem:[#allocation7 + $0x7] sm:$0x1]
    %v305 = vld [vmem:[#allocation7 + $0x8] sm:$0x1]
    %s306 = scalar_lea.vmem [#allocation5], 128
    %v307 = vld [vmem:[%s306] sm:$0xf]
    %v308 = vld [vmem:[%s306 + $0x4] sm:$0xf]
    %v309 = vld [vmem:[%s306 + $0x8] sm:$0xf]
    %v310 = vld [vmem:[%s306 + $0xc] sm:$0xf]
    %v311 = vld [vmem:[%s306 + $0x10] sm:$0xf]
    %v312 = vld [vmem:[%s306 + $0x14] sm:$0xf]
    %v313 = vld [vmem:[%s306 + $0x18] sm:$0xf]
    %v314 = vld [vmem:[%s306 + $0x1c] sm:$0xf]
    %v315 = vld [vmem:[%s306 + $0x20] sm:$0xf]
    %v316 = vld [vmem:[%s306 + $0x24] sm:$0xf]
    %v317 = vld [vmem:[%s306 + $0x28] sm:$0xf]
    %v318 = vld [vmem:[%s306 + $0x2c] sm:$0xf]
    %v319 = vld [vmem:[%s306 + $0x30] sm:$0xf]
    %v320 = vld [vmem:[%s306 + $0x34] sm:$0xf]
    %v321 = vld [vmem:[%s306 + $0x38] sm:$0xf]
    %v322 = vld [vmem:[%s306 + $0x3c] sm:$0xf]
    %v323 = vperm.slane %v303, 0
    %v340 = vunpack.c.l.b16 %v307
    %v341 = vunpack.c.l.b16 %v308
    %v342 = vunpack.c.l.b16 %v309
    %v343 = vunpack.c.l.b16 %v310
    %v344 = vunpack.c.l.b16 %v311
    %v345 = vunpack.c.l.b16 %v312
    %v346 = vunpack.c.l.b16 %v313
    %v347 = vunpack.c.l.b16 %v314
    %v348 = vunpack.c.l.b16 %v315
    %v349 = vunpack.c.l.b16 %v316
    %v350 = vunpack.c.l.b16 %v317
    %v351 = vunpack.c.l.b16 %v318
    %v352 = vunpack.c.l.b16 %v319
    %v353 = vunpack.c.l.b16 %v320
    %v354 = vunpack.c.l.b16 %v321
    %v355 = vunpack.c.l.b16 %v322
    %v356 = vpack.c.b16 %v341, %v340
    %v357 = vpack.c.b16 %v343, %v342
    %v358 = vpack.c.b16 %v345, %v344
    %v359 = vpack.c.b16 %v347, %v346
    %v360 = vpack.c.b16 %v349, %v348
    %v361 = vpack.c.b16 %v351, %v350
    %v362 = vpack.c.b16 %v353, %v352
    %v363 = vpack.c.b16 %v355, %v354
    %372 = vmatpush.bf16.msra.mxu0 %v363
    %373 = vmatpush.bf16.msra.mxu0 %v362
    %374 = vmatpush.bf16.msra.mxu0 %v361
    %375 = vmatpush.bf16.msra.mxu0 %v360
    %376 = vmatpush.bf16.msra.mxu0 %v359
    %377 = vmatpush.bf16.msra.mxu0 %v358
    %378 = vmatpush.bf16.msra.mxu0 %v357
    %379 = vmatpush.bf16.msra.mxu0 %v356
    %380 = vmatmul.bf16.gmra.mxu0 %v302
    %v381 = vpop.f32.mrf.mxu0
    %v382 = vadd.f32 %v323, %v381
    %v383 = vpop.f32.mrf.mxu0
    %384 = vdwg.mxu0
    %v385 = vrot.slane %v382, 4
    %v386 = vadd.f32 %v382, %v385
    %v387 = vrot.slane %v386, 2
    %v388 = vadd.f32 %v386, %v387
    %v389 = vrot.slane %v388, 1
    %v390 = vadd.f32 %v388, %v389
    %v391 = vmul.f32 %v390, %v154
    %v392 = vsub.f32 %v382, %v391
    %v393 = vmul.f32 %v392, %v392
    %v394 = vrot.slane %v393, 4
    %v395 = vadd.f32 %v393, %v394
    %v396 = vrot.slane %v395, 2
    %v397 = vadd.f32 %v395, %v396
    %v398 = vrot.slane %v397, 1
    %v399 = vadd.f32 %v397, %v398
    %v400 = vmul.f32 %v399, %v154
    %v401 = vadd.f32 %v400, 1e-05
    %v402 = vrsqrt.pop %v401
    %v403 = vmul.f32 %v402, %v401
    %v404 = vmul.f32 %v403, %v402
    %v405 = vmul.f32 0.5, %v404
    %v406 = vsub.f32 1.5, %v405
    %v407 = vmul.f32 %v402, %v406
    %vm408 = vweird.f32 %v401
    %vm409 = vweird.f32 %v402
    %vm410 = vmor %vm408, %vm409
    %v411 = vsel %vm410, %v402, %v407
    %v412 = vmul.f32 %v304, %v411
    %v413 = vmul.f32 %v391, %v412
    %v414 = vsub.f32 %v305, %v413
    %v415 = vperm.slane %v412, 0
    %v416 = vmul.f32 %v382, %v415
    %v417 = vperm.slane %v414, 0
    %v418 = vadd.f32 %v416, %v417
    %v419 = vmax.f32 %v418, 0.0
    %v420 = vpack.c.bf16 %v419, %v419
    %s421 = scalar_lea.vmem [#allocation5], 192
    %v422 = vld [vmem:[%s421] sm:$0xf]
    %v423 = vld [vmem:[%s421 + $0x4] sm:$0xf]
    %v424 = vld [vmem:[%s421 + $0x8] sm:$0xf]
    %v425 = vld [vmem:[%s421 + $0xc] sm:$0xf]
    %v426 = vld [vmem:[%s421 + $0x10] sm:$0xf]
    %v427 = vld [vmem:[%s421 + $0x14] sm:$0xf]
    %v428 = vld [vmem:[%s421 + $0x18] sm:$0xf]
    %v429 = vld [vmem:[%s421 + $0x1c] sm:$0xf]
    %v430 = vld [vmem:[%s421 + $0x20] sm:$0xf]
    %v431 = vld [vmem:[%s421 + $0x24] sm:$0xf]
    %v432 = vld [vmem:[%s421 + $0x28] sm:$0xf]
    %v433 = vld [vmem:[%s421 + $0x2c] sm:$0xf]
    %v434 = vld [vmem:[%s421 + $0x30] sm:$0xf]
    %v435 = vld [vmem:[%s421 + $0x34] sm:$0xf]
    %v436 = vld [vmem:[%s421 + $0x38] sm:$0xf]
    %v437 = vld [vmem:[%s421 + $0x3c] sm:$0xf]
    %v438 = vld [vmem:[#allocation7 + $0x9] sm:$0x1]
    %v439 = vperm.slane %v438, 0
    %v456 = vunpack.c.l.b16 %v422
    %v457 = vunpack.c.l.b16 %v423
    %v458 = vunpack.c.l.b16 %v424
    %v459 = vunpack.c.l.b16 %v425
    %v460 = vunpack.c.l.b16 %v426
    %v461 = vunpack.c.l.b16 %v427
    %v462 = vunpack.c.l.b16 %v428
    %v463 = vunpack.c.l.b16 %v429
    %v464 = vunpack.c.l.b16 %v430
    %v465 = vunpack.c.l.b16 %v431
    %v466 = vunpack.c.l.b16 %v432
    %v467 = vunpack.c.l.b16 %v433
    %v468 = vunpack.c.l.b16 %v434
    %v469 = vunpack.c.l.b16 %v435
    %v470 = vunpack.c.l.b16 %v436
    %v471 = vunpack.c.l.b16 %v437
    %v472 = vpack.c.b16 %v457, %v456
    %v473 = vpack.c.b16 %v459, %v458
    %v474 = vpack.c.b16 %v461, %v460
    %v475 = vpack.c.b16 %v463, %v462
    %v476 = vpack.c.b16 %v465, %v464
    %v477 = vpack.c.b16 %v467, %v466
    %v478 = vpack.c.b16 %v469, %v468
    %v479 = vpack.c.b16 %v471, %v470
    %488 = vmatpush.bf16.msra.mxu0 %v479
    %489 = vmatpush.bf16.msra.mxu0 %v478
    %490 = vmatpush.bf16.msra.mxu0 %v477
    %491 = vmatpush.bf16.msra.mxu0 %v476
    %492 = vmatpush.bf16.msra.mxu0 %v475
    %493 = vmatpush.bf16.msra.mxu0 %v474
    %494 = vmatpush.bf16.msra.mxu0 %v473
    %495 = vmatpush.bf16.msra.mxu0 %v472
    %496 = vmatmul.bf16.gmra.mxu0 %v420
    %v497 = vpop.f32.mrf.mxu0
    %v498 = vadd.f32 %v439, %v497
    %v499 = vpop.f32.mrf.mxu0
    %500 = vdwg.mxu0
    %501 = vst [vmem:[#allocation8] sm:$0xff] %v498
    // Predicated region
    $region26: #{tpu_custom_call.1} parent=1 // pred_check
      _
    $region27: #{tpu_custom_call.1} parent=1 // pred_check_branch
      %503 = sbr.rel (0) target = $region29
    $region28: #{tpu_custom_call.1} parent=1 // pred_region
      %505 = vsyncadd [#allocation4], 0
      %s507 = sshll.u32 [#allocation8], 4
      %s508 = int_to_ptr.vmem [resolvable:$true] %s507
      %s509 = sshll.u32 %s3, 4
      %s510 = int_to_ptr.hbm [resolvable:$true] %s509
      %512 = dma.vmem_to_hbm [thread:$0]  %s508, 128, %s510, [#allocation4]
    $region29: #{tpu_custom_call.1} parent=1 // pred_fallthru
      _
    // Predicated region
    $region30: #{tpu_custom_call.1} parent=1 // pred_check
      _
    $region31: #{tpu_custom_call.1} parent=1 // pred_check_branch
      %514 = sbr.rel (0) target = $region33
    $region32: #{tpu_custom_call.1} parent=1 // pred_region
      %516 = dma.done [#allocation4], 128
    $region33: #{tpu_custom_call.1} parent=1 // pred_fallthru
      _
    %517 = vsyncpa [#allocation3], 1
    %518 = vsyncpa [#allocation6], 1
    %519 = vsyncpa [#allocation4], 1

</llo_original>
